<compile_context>
chip_gen: v5e
topology: v5e:2x2
jax: 0.10.0
libtpu: 0.0.40
codegen_flags: <defaults>
</compile_context>

<pallas_src>
import jax
import jax.numpy as jnp
from jax.experimental import pallas as pl
from jax.experimental.pallas import tpu as pltpu


def _concat_kernel(*refs):
    """refs = (*in_refs, out_ref). in_ref i is (TB, F_i); out_ref is (TB, F_total).

    Each input is streamed load -> (optional cast) -> store into its static
    column band of the output tile.  Offsets/widths are Python ints, so every
    slice is static; unaligned bands lower to shifted/masked stores, aligned
    bands to plain full-lane stores.
    """
    *in_refs, out_ref = refs
    off = 0
    for r in in_refs:
        w = r.shape[-1]
        val = r[...]
        if val.dtype != out_ref.dtype:
            val = val.astype(out_ref.dtype)  # VPU cast, hidden under the tile DMAs
        out_ref[:, off:off + w] = val
        off += w


def _vmem_budgets():
    """Returns (tile_budget_bytes, vmem_limit_bytes) scaled to this chip's VMEM."""
    cap = 64 << 20  # conservative default: v7x per-TensorCore VMEM
    try:
        info = pltpu.get_tpu_info()
        cap = int(getattr(info, "vmem_capacity_bytes", cap)) or cap
    except Exception:
        pass
    # Tile budget covers the double-buffered input + output tiles; the limit
    # leaves headroom for Mosaic-internal scratch.
    #   v7x   (64 MiB):  ~22 MiB tiles / ~42 MiB limit
    #   v5e/6e(128 MiB): ~45 MiB tiles / ~83 MiB limit
    return int(cap * 0.35), int(cap * 0.65)


_MIN_PIPELINE_STEPS = 4  # >=2 for double-buffering; >=4 so v7x's 2 TCs get >=2 steps each


def _pick_batch_tile(B, per_row_bytes, tile_budget_bytes):
    """Pick the batch-tile size, or None if even the smallest legal tile overflows.

    per_row_bytes already includes the x2 double-buffering factor.
    """
    min_tb = B if B <= 8 else 8
    if min_tb * per_row_bytes > tile_budget_bytes:
        return None
    if B <= 8:
        return B  # block == full batch dim is always a legal block shape
    tb_fit = tile_budget_bytes // per_row_bytes
    tb_target = pl.cdiv(B, _MIN_PIPELINE_STEPS)  # keep several grid steps alive
    tb = min(tb_fit, tb_target)
    if tb >= B:
        return B
    return max(8, (tb // 8) * 8)  # partial blocks must respect the 8-sublane rule


def concat_forward(*inputs):
    """Pallas implementation of Concat.forward(*inputs)."""
    if not inputs:
        raise ValueError("Concat.forward needs at least one input")
    B = inputs[0].shape[0]
    for x in inputs:
        if x.shape[0] != B:
            raise ValueError(f"all inputs must share batch dim {B}, got shape {x.shape}")

    # Glue: row-major flatten to (B, F_i), identical to torch.Tensor.view(B, -1).
    flats = [jnp.reshape(x, (B, -1)) for x in inputs]
    out_dtype = jnp.result_type(*[f.dtype for f in flats])
    flats = [f for f in flats if f.shape[1] > 0]  # drop degenerate zero-width branches
    if not flats:
        return jnp.zeros((B, 0), dtype=out_dtype)
    if len(flats) == 1:
        # Concat of a single branch is the identity on the flattened view.
        return flats[0].astype(out_dtype)

    widths = [f.shape[1] for f in flats]
    total = sum(widths)
    out_itemsize = jnp.dtype(out_dtype).itemsize
    in_row_bytes = sum(w * f.dtype.itemsize for w, f in zip(widths, flats))
    out_row_bytes = total * out_itemsize
    # Double-buffered inputs + double-buffered output, per batch row.
    per_row_bytes = 2 * (in_row_bytes + out_row_bytes)

    tile_budget, vmem_limit = _vmem_budgets()
    tb = _pick_batch_tile(B, per_row_bytes, tile_budget)
    if tb is None:
        # Ultra-wide rows: even an 8-row full-width tile overflows the VMEM
        # budget.  Fall back to XLA's native concat (pure bandwidth op) rather
        # than fail to compile.
        # TODO(synk): in-kernel column tiling / HBM->HBM DMA variant for this case.
        return jnp.concatenate([f.astype(out_dtype) for f in flats], axis=1)

    grid = (pl.cdiv(B, tb),)
    in_specs = [pl.BlockSpec((tb, w), lambda i: (i, 0)) for w in widths]
    out_spec = pl.BlockSpec((tb, total), lambda i: (i, 0))

    return pl.pallas_call(
        _concat_kernel,
        out_shape=jax.ShapeDtypeStruct((B, total), out_dtype),
        grid=grid,
        in_specs=in_specs,
        out_specs=out_spec,
        compiler_params=pltpu.CompilerParams(
            dimension_semantics=("parallel",),
            vmem_limit_bytes=vmem_limit,
        ),
        cost_estimate=pl.CostEstimate(
            flops=0,
            transcendentals=0,
            bytes_accessed=B * (in_row_bytes + out_row_bytes),
        ),
    )(*flats)


if __name__ == "__main__":
    key = jax.random.PRNGKey(0)
    k1, k2, k3, k4, k5 = jax.random.split(key, 5)

    # Case 1: small batch, heterogeneous NAS branch outputs, mixed dtypes
    # (exercises the in-kernel cast and the full-batch single-tile path).
    B = 2
    x1 = jax.random.normal(k1, (B, 4, 8, 8), dtype=jnp.float32)   # conv map (NCHW)
    x2 = jax.random.normal(k2, (B, 32), dtype=jnp.bfloat16)       # dense feature
    x3 = jax.random.normal(k3, (B, 4, 16), dtype=jnp.float32)     # seq feature
    out = jax.block_until_ready(concat_forward(x1, x2, x3))
    ref = jnp.concatenate(
        [
            jnp.reshape(x1, (B, -1)),
            jnp.reshape(x2, (B, -1)).astype(jnp.float32),
            jnp.reshape(x3, (B, -1)),
        ],
        axis=1,
    )
    assert out.shape == (B, 4 * 8 * 8 + 32 + 4 * 16)
    assert out.dtype == ref.dtype
    assert jnp.allclose(out, ref), "Pallas concat mismatch vs reference (case 1)"

    # Case 2: larger batch so the grid has multiple pipelined (parallel) steps.
    B2 = 32
    y1 = jax.random.normal(k4, (B2, 4, 8, 8), dtype=jnp.float32)
    y2 = jax.random.normal(k5, (B2, 48), dtype=jnp.float32)
    out2 = jax.block_until_ready(concat_forward(y1, y2))
    ref2 = jnp.concatenate(
        [jnp.reshape(y1, (B2, -1)), jnp.reshape(y2, (B2, -1))], axis=1
    )
    assert out2.shape == (B2, 4 * 8 * 8 + 48)
    assert jnp.allclose(out2, ref2), "Pallas concat mismatch vs reference (case 2)"

    print("KERNEL_OK")
</pallas_src>

<mosaic_0001>
module attributes {stable_mosaic.version = 11 : i64} {
  func.func @_concat_kernel(%arg0: i32, %arg1: memref<2x256xf32, #tpu.memory_space<vmem>>, %arg2: memref<2x32xbf16, #tpu.memory_space<vmem>>, %arg3: memref<2x64xf32, #tpu.memory_space<vmem>>, %arg4: memref<2x352xf32, #tpu.memory_space<vmem>>) attributes {dimension_semantics = [#tpu.dimension_semantics<parallel>], iteration_bounds = array<i64: 1>, scalar_prefetch = 0 : i64, scratch_operands = 0 : i64, tpu.core_type = #tpu.core_type<tc>, window_params = [{transform_indices = @transform_0, window_bounds = array<i64: 2, 256>}, {transform_indices = @transform_1, window_bounds = array<i64: 2, 32>}, {transform_indices = @transform_2, window_bounds = array<i64: 2, 64>}, {transform_indices = @transform_3, window_bounds = array<i64: 2, 352>}]} {
    %c0 = arith.constant 0 : index
    %c0_0 = arith.constant 0 : index
    %0 = vector.load %arg1[%c0, %c0_0] : memref<2x256xf32, #tpu.memory_space<vmem>>, vector<2x256xf32>
    %c0_1 = arith.constant 0 : index
    %c0_2 = arith.constant 0 : index
    %1 = vector.load %arg4[%c0_1, %c0_2] : memref<2x352xf32, #tpu.memory_space<vmem>>, vector<2x256xf32>
    tpu.vector_store %arg4[%c0_1, %c0_2], %0 {strides = array<i32>} : memref<2x352xf32, #tpu.memory_space<vmem>>, vector<2x256xf32>,
    %c0_3 = arith.constant 0 : index
    %c0_4 = arith.constant 0 : index
    %2 = vector.load %arg2[%c0_3, %c0_4] : memref<2x32xbf16, #tpu.memory_space<vmem>>, vector<2x32xbf16>
    %3 = arith.extf %2 : vector<2x32xbf16> to vector<2x32xf32>
    %c0_5 = arith.constant 0 : index
    %c256 = arith.constant 256 : index
    %4 = vector.load %arg4[%c0_5, %c256] : memref<2x352xf32, #tpu.memory_space<vmem>>, vector<2x32xf32>
    tpu.vector_store %arg4[%c0_5, %c256], %3 {strides = array<i32>} : memref<2x352xf32, #tpu.memory_space<vmem>>, vector<2x32xf32>,
    %c0_6 = arith.constant 0 : index
    %c0_7 = arith.constant 0 : index
    %5 = vector.load %arg3[%c0_6, %c0_7] : memref<2x64xf32, #tpu.memory_space<vmem>>, vector<2x64xf32>
    %c0_8 = arith.constant 0 : index
    %c288 = arith.constant 288 : index
    %6 = vector.load %arg4[%c0_8, %c288] : memref<2x352xf32, #tpu.memory_space<vmem>>, vector<2x64xf32>
    tpu.vector_store %arg4[%c0_8, %c288], %5 {strides = array<i32>} : memref<2x352xf32, #tpu.memory_space<vmem>>, vector<2x64xf32>,
    return
  }
  func.func @transform_0(%arg0: i32) -> (i32, i32) {
    %c0_i32 = arith.constant 0 : i32
    %c0_i32_0 = arith.constant 0 : i32
    return %arg0, %c0_i32 : i32, i32
  }
  func.func @transform_1(%arg0: i32) -> (i32, i32) {
    %c0_i32 = arith.constant 0 : i32
    %c0_i32_0 = arith.constant 0 : i32
    return %arg0, %c0_i32 : i32, i32
  }
  func.func @transform_2(%arg0: i32) -> (i32, i32) {
    %c0_i32 = arith.constant 0 : i32
    %c0_i32_0 = arith.constant 0 : i32
    return %arg0, %c0_i32 : i32, i32
  }
  func.func @transform_3(%arg0: i32) -> (i32, i32) {
    %c0_i32 = arith.constant 0 : i32
    %c0_i32_0 = arith.constant 0 : i32
    return %arg0, %c0_i32 : i32, i32
  }
}

</mosaic_0001>

<llo_original>
// kernel: tpu_custom_call.1
$region0: #{tpu_custom_call.1}
  #allocation0 [shape = 'u32[]', space=smem, size = 0x4, offset = 0x4, fixed_abs, tag = 'smem constant byte address 0x4 - core index']
  #allocation1 [shape = 'u32[72,128]{1,0:T(1,128)}', space=vmem, size = 0x9000, scoped, tag = 'internal scratch']
  %s0 = inlined_call_operand.hbm [shape: f32[2,256], index: 0, kind: input, shape index: {}]
  %s1 = inlined_call_operand.hbm [shape: bf16[2,32], index: 1, kind: input, shape index: {}]
  %s2 = inlined_call_operand.hbm [shape: f32[2,64], index: 2, kind: input, shape index: {}]
  %s3 = inlined_call_operand.hbm [shape: f32[2,352], index: 3, kind: output, shape index: {}]
  %s4 = sld [smem:[#allocation0]]
  $region34: #{tpu_custom_call.1} parent=0
    _
  %s6 = ssub.s32 1, %s4
  %s7 = scalar_select 0, %s6, %s4
  $region1: #{tpu_custom_call.1} parent=0
    #allocation2 [shape = 'u8[2048]{0}', space=vmem, size = 0x800, scoped, tag = 'input window, operand 0, single buffered']
    #allocation3 [shape = 's32[1]{0}', space=sflag, size = 0x4, scoped, tag = 'scoped memory for tpu_custom_call.1']
    #allocation4 [shape = 's32[1]{0}', space=sflag, size = 0x4, scoped, tag = 'scoped memory for tpu_custom_call.1']
    #allocation5 [shape = 'u8[512]{0}', space=vmem, size = 0x400, scoped, tag = 'input window, operand 1, single buffered']
    #allocation6 [shape = 's32[1]{0}', space=sflag, size = 0x4, scoped, tag = 'scoped memory for tpu_custom_call.1']
    #allocation7 [shape = 'u8[1024]{0}', space=vmem, size = 0x400, scoped, tag = 'input window, operand 2, single buffered']
    #allocation8 [shape = 'u8[3072]{0}', space=vmem, size = 0xc00, scoped, tag = 'output window, operand 0, single buffered']
    %8 = vsyncpa [#allocation3], 0
    %9 = vsyncpa [#allocation6], 0
    %10 = vsyncpa [#allocation4], 0
    // Predicated region
    $region2: #{tpu_custom_call.1} parent=1 // pred_check
      _
    $region3: #{tpu_custom_call.1} parent=1 // pred_check_branch
      %12 = sbr.rel (0) target = $region5
    $region4: #{tpu_custom_call.1} parent=1 // pred_region
      %14 = vsyncadd [#allocation3], 0
      %s16 = sshll.u32 %s0, 4
      %s17 = int_to_ptr.hbm [resolvable:$true] %s16
      %s18 = sshll.u32 [#allocation2], 4
      %s19 = int_to_ptr.vmem [resolvable:$true] %s18
      %21 = dma.hbm_to_vmem [thread:$0]  %s17, 64, %s19, [#allocation3]
    $region5: #{tpu_custom_call.1} parent=1 // pred_fallthru
      _
    // Predicated region
    $region6: #{tpu_custom_call.1} parent=1 // pred_check
      _
    $region7: #{tpu_custom_call.1} parent=1 // pred_check_branch
      %23 = sbr.rel (0) target = $region9
    $region8: #{tpu_custom_call.1} parent=1 // pred_region
      %25 = vsyncadd [#allocation6], 0
      %s27 = sshll.u32 %s1, 4
      %s28 = int_to_ptr.hbm [resolvable:$true] %s27
      %s29 = sshll.u32 [#allocation5], 4
      %s30 = int_to_ptr.vmem [resolvable:$true] %s29
      %32 = dma.hbm_to_vmem [thread:$0]  %s28, 16, %s30, [#allocation6]
    $region9: #{tpu_custom_call.1} parent=1 // pred_fallthru
      _
    // Predicated region
    $region10: #{tpu_custom_call.1} parent=1 // pred_check
      _
    $region11: #{tpu_custom_call.1} parent=1 // pred_check_branch
      %34 = sbr.rel (0) target = $region13
    $region12: #{tpu_custom_call.1} parent=1 // pred_region
      %36 = vsyncadd [#allocation6], 0
      %s38 = sshll.u32 %s2, 4
      %s39 = int_to_ptr.hbm [resolvable:$true] %s38
      %s40 = sshll.u32 [#allocation7], 4
      %s41 = int_to_ptr.vmem [resolvable:$true] %s40
      %43 = dma.hbm_to_vmem [thread:$0]  %s39, 32, %s41, [#allocation6]
    $region13: #{tpu_custom_call.1} parent=1 // pred_fallthru
      _
    // Predicated region
    $region14: #{tpu_custom_call.1} parent=1 // pred_check
      _
    $region15: #{tpu_custom_call.1} parent=1 // pred_check_branch
      %45 = sbr.rel (0) target = $region17
    $region16: #{tpu_custom_call.1} parent=1 // pred_region
      %47 = dma.done [#allocation3], 64
    $region17: #{tpu_custom_call.1} parent=1 // pred_fallthru
      _
    // Predicated region
    $region18: #{tpu_custom_call.1} parent=1 // pred_check
      _
    $region19: #{tpu_custom_call.1} parent=1 // pred_check_branch
      %49 = sbr.rel (0) target = $region21
    $region20: #{tpu_custom_call.1} parent=1 // pred_region
      %51 = dma.done [#allocation6], 16
    $region21: #{tpu_custom_call.1} parent=1 // pred_fallthru
      _
    // Predicated region
    $region22: #{tpu_custom_call.1} parent=1 // pred_check
      _
    $region23: #{tpu_custom_call.1} parent=1 // pred_check_branch
      %53 = sbr.rel (0) target = $region25
    $region24: #{tpu_custom_call.1} parent=1 // pred_region
      %55 = dma.done [#allocation6], 32
    $region25: #{tpu_custom_call.1} parent=1 // pred_fallthru
      _
    %v56 = vld [vmem:[#allocation2] sm:$0xf]
    %57 = vst [vmem:[#allocation8] sm:$0xf] %v56
    %v58 = vld [vmem:[#allocation5] sm:$0x1]
    %v59 = vunpack.c.l.bf16 %v58
    %vm60 = vcmask 254976
    %61 = vst.msk [vmem:[#allocation8 + $0x4] sm:$0x3] %vm60, %v59
    %v62 = vld [vmem:[#allocation7] sm:$0x3]
    %64 = vrot.lane.b32.xlu0 %v62, 32
    %v65 = vpop.permute.xlu0 %64
    %vm67 = vcmask 779520
    %68 = vst.msk [vmem:[#allocation8 + $0x4] sm:$0x3] %vm67, %v65
    // Predicated region
    $region26: #{tpu_custom_call.1} parent=1 // pred_check
      _
    $region27: #{tpu_custom_call.1} parent=1 // pred_check_branch
      %70 = sbr.rel (0) target = $region29
    $region28: #{tpu_custom_call.1} parent=1 // pred_region
      %72 = vsyncadd [#allocation4], 0
      %s74 = sshll.u32 [#allocation8], 4
      %s75 = int_to_ptr.vmem [resolvable:$true] %s74
      %s76 = sshll.u32 %s3, 4
      %s77 = int_to_ptr.hbm [resolvable:$true] %s76
      %79 = dma.vmem_to_hbm [thread:$0]  %s75, 96, %s77, [#allocation4]
    $region29: #{tpu_custom_call.1} parent=1 // pred_fallthru
      _
    // Predicated region
    $region30: #{tpu_custom_call.1} parent=1 // pred_check
      _
    $region31: #{tpu_custom_call.1} parent=1 // pred_check_branch
      %81 = sbr.rel (0) target = $region33
    $region32: #{tpu_custom_call.1} parent=1 // pred_region
      %83 = dma.done [#allocation4], 96
    $region33: #{tpu_custom_call.1} parent=1 // pred_fallthru
      _
    %84 = vsyncpa [#allocation3], 1
    %85 = vsyncpa [#allocation6], 1
    %86 = vsyncpa [#allocation4], 1

</llo_original>
